<compile_context>
chip_gen: v5e
topology: v5e:2x2
jax: 0.10.0
libtpu: 0.0.40
codegen_flags: <defaults>
</compile_context>

<pallas_src>
import functools
import math

import jax
import jax.numpy as jnp
from jax import lax
from jax.experimental import pallas as pl
from jax.experimental.pallas import tpu as pltpu

LANE = 128
SUBLANE = 8


def _round_up(n, m):
    return ((n + m - 1) // m) * m


def _pad_last(a, width):
    pad = width - a.shape[-1]
    if pad == 0:
        return a
    return jnp.pad(a, [(0, 0)] * (a.ndim - 1) + [(0, pad)])


def _vmem_capacity_bytes():
    """Physical VMEM per TensorCore; fallback is v7x's 64 MiB (the smallest)."""
    try:
        return int(pltpu.get_tpu_info().vmem_capacity_bytes)
    except Exception:
        return 64 * 1024 * 1024


def _pick_divisor_tile(n, unit, target):
    """Largest multiple of `unit` <= target that divides n, else n (full dim)."""
    t = (min(target, n) // unit) * unit
    while t >= unit:
        if n % t == 0:
            return t
        t -= unit
    return n


def _pick_attn_tile(S, Hp, itemsize, budget, target):
    """Largest sublane-aligned seq tile whose pass-2 VMEM footprint fits budget."""
    s_cap = _round_up(S, SUBLANE)

    def footprint(ts):
        # q/k/v/o blocks double-buffered + f32 accumulator + m/l scratch.
        return 8 * ts * Hp * itemsize + ts * Hp * 4 + 2 * ts * 4

    cands = [c for c in (512, 384, 256, 128) if c <= min(target, s_cap)]
    if s_cap <= target:
        cands.append(s_cap)
    for ts in sorted(set(cands), reverse=True):
        if footprint(ts) <= budget:
            return ts
    ts = SUBLANE
    while 2 * ts <= min(target, s_cap) and footprint(2 * ts) <= budget:
        ts *= 2
    return ts


# ---------------------------------------------------------------------------
# Pass 1: fused, tiled QKV projection
# ---------------------------------------------------------------------------
def _qkv_proj_kernel(x_ref, w_ref, b_ref, o_ref, acc_ref):
    kk = pl.program_id(3)

    @pl.when(kk == 0)
    def _init():
        acc_ref[...] = jnp.zeros_like(acc_ref)

    acc_ref[...] += jnp.dot(x_ref[0], w_ref[...],
                            preferred_element_type=jnp.float32)

    @pl.when(kk == pl.num_programs(3) - 1)
    def _finalize():
        o_ref[0] = (acc_ref[...] + b_ref[...].astype(jnp.float32)
                    ).astype(o_ref.dtype)


# ---------------------------------------------------------------------------
# Pass 2: flash-style causal attention (online softmax, flattened triangle)
# ---------------------------------------------------------------------------
def _flash_causal_kernel(qi_ref, ki_ref, q_ref, k_ref, v_ref, o_ref,
                         m_sc, l_sc, acc_sc, *, scale):
    step = pl.program_id(1)
    qi = qi_ref[step]
    ki = ki_ref[step]

    @pl.when(ki == 0)
    def _init():
        m_sc[...] = jnp.full_like(m_sc, -jnp.inf)
        l_sc[...] = jnp.zeros_like(l_sc)
        acc_sc[...] = jnp.zeros_like(acc_sc)

    def _attend(masked):
        q = q_ref[0]                                              # (T, Hp)
        k = k_ref[0]                                              # (T, Hp)
        v = v_ref[0]                                              # (T, Hp)
        # Contract last dims directly: no materialized k.T, no XLU transpose.
        s = lax.dot_general(q, k,
                            dimension_numbers=(((1,), (1,)), ((), ())),
                            preferred_element_type=jnp.float32) * scale
        if masked:
            # Only the diagonal tile needs a mask (aligned square tiles).
            r = lax.broadcasted_iota(jnp.int32, s.shape, 0)
            c = lax.broadcasted_iota(jnp.int32, s.shape, 1)
            s = jnp.where(c <= r, s, -jnp.inf)
        # Online softmax, strictly in f32.
        m_prev = m_sc[...]
        m_new = jnp.maximum(m_prev, jnp.max(s, axis=-1, keepdims=True))
        alpha = jnp.exp(m_prev - m_new)
        p = jnp.exp(s - m_new)
        l_sc[...] = alpha * l_sc[...] + jnp.sum(p, axis=-1, keepdims=True)
        acc_sc[...] = alpha * acc_sc[...] + jnp.dot(
            p.astype(v.dtype), v, preferred_element_type=jnp.float32)
        m_sc[...] = m_new

    # Strictly-below-diagonal tile: unmasked, no iota / where at all.
    @pl.when(ki < qi)
    def _off_diag():
        _attend(masked=False)

    # Diagonal tile: masked; it is the last causal tile for this q block,
    # so finalize here.
    @pl.when(ki == qi)
    def _diag_and_finalize():
        _attend(masked=True)
        l = l_sc[...]
        inv_l = pl.reciprocal(l, approx=True)        # EUP seed (free slot)
        inv_l = inv_l * (2.0 - l * inv_l)            # one Newton step -> ~exact
        o_ref[0] = (acc_sc[...] * inv_l).astype(o_ref.dtype)


# ---------------------------------------------------------------------------
# Wrappers
# ---------------------------------------------------------------------------
def prepare_qkv_params(wq, bq, wk, bk, wv, bv, *, dtype=None):
    """Do-once fusion + lane padding of the projection parameters (hoisted out
    of the per-call path).  Returns (w_qkv (D,3*Hp), b_qkv (1,3*Hp), H)."""
    H = wq.shape[-1]
    Hp = _round_up(H, LANE)
    dt = dtype if dtype is not None else wq.dtype
    w_qkv = jnp.concatenate(
        [_pad_last(wq, Hp), _pad_last(wk, Hp), _pad_last(wv, Hp)],
        axis=-1).astype(dt)
    b_qkv = jnp.concatenate(
        [_pad_last(bq.reshape(1, -1), Hp),
         _pad_last(bk.reshape(1, -1), Hp),
         _pad_last(bv.reshape(1, -1), Hp)],
        axis=-1).astype(dt)
    return w_qkv, b_qkv, H


def causal_self_attention(x, w_qkv, b_qkv, hidden_dim, *,
                          tile_target=512, mxu_dtype=None):
    """x: (B,S,D); fused/padded params from prepare_qkv_params. Returns (B,S,H).
    mxu_dtype=jnp.bfloat16 casts MXU operands / the qkv intermediate to bf16
    (faster on all TPU generations, slightly relaxed numerics)."""
    B, S, D = x.shape
    H = hidden_dim
    Hp = w_qkv.shape[-1] // 3
    out_dtype = x.dtype
    compute_dtype = mxu_dtype if mxu_dtype is not None else x.dtype
    itemsize = jnp.dtype(compute_dtype).itemsize

    cap = _vmem_capacity_bytes()
    budget = int(cap * 0.55)

    ts = _pick_attn_tile(S, Hp, itemsize, budget, tile_target)
    Sp = _round_up(S, ts)
    nq = Sp // ts

    x_c = x.astype(compute_dtype)
    if Sp != S:
        # Padded keys are strictly above the causal diagonal of every real
        # query -> no extra masking needed; padded query rows are sliced off.
        x_c = jnp.pad(x_c, ((0, 0), (0, Sp - S), (0, 0)))
    w_c = w_qkv.astype(compute_dtype)
    b_c = b_qkv.astype(compute_dtype)

    # ---- pass 1: fused, tiled QKV projection -> qkv (B, Sp, 3*Hp) ----
    tn = _pick_divisor_tile(Hp, LANE, 512)       # divides Hp => divides 3*Hp
    tk = _pick_divisor_tile(D, LANE, 512)
    n_n = (3 * Hp) // tn
    n_k = D // tk

    est1 = (2 * (ts * tk + tk * tn + ts * tn) * itemsize
            + ts * tn * 4 + 2 * tn * itemsize)
    vlim1 = int(min(max(2 * est1, 32 * 1024 * 1024), int(cap * 0.85)))

    qkv = pl.pallas_call(
        _qkv_proj_kernel,
        out_shape=jax.ShapeDtypeStruct((B, Sp, 3 * Hp), compute_dtype),
        grid_spec=pltpu.PrefetchScalarGridSpec(
            num_scalar_prefetch=0,
            grid=(B, nq, n_n, n_k),
            in_specs=[
                pl.BlockSpec((1, ts, tk), lambda b, si, ni, ki: (b, si, ki)),
                pl.BlockSpec((tk, tn), lambda b, si, ni, ki: (ki, ni)),
                pl.BlockSpec((1, tn), lambda b, si, ni, ki: (0, ni)),
            ],
            out_specs=pl.BlockSpec((1, ts, tn),
                                   lambda b, si, ni, ki: (b, si, ni)),
            scratch_shapes=[pltpu.VMEM((ts, tn), jnp.float32)],
        ),
        compiler_params=pltpu.CompilerParams(
            dimension_semantics=("parallel", "parallel", "parallel",
                                 "arbitrary"),
            vmem_limit_bytes=vlim1),
    )(x_c, w_c, b_c)

    # ---- pass 2: flash-style causal attention over the lower triangle ----
    scale = 1.0 / math.sqrt(H)   # true hidden dim (matches torch reference)

    # Flattened causal schedule: exactly nq*(nq+1)/2 (qi, ki<=qi) steps per
    # batch; the scalar-prefetched index arrays drive all index_maps.
    qi_l, ki_l = [], []
    for q_idx in range(nq):
        for k_idx in range(q_idx + 1):
            qi_l.append(q_idx)
            ki_l.append(k_idx)
    qi_arr = jnp.array(qi_l, dtype=jnp.int32)
    ki_arr = jnp.array(ki_l, dtype=jnp.int32)
    n_steps = len(qi_l)

    est2 = 8 * ts * Hp * itemsize + ts * Hp * 4 + 2 * ts * 4
    vlim2 = int(min(max(2 * est2, 32 * 1024 * 1024), int(cap * 0.85)))

    out_p = pl.pallas_call(
        functools.partial(_flash_causal_kernel, scale=scale),
        out_shape=jax.ShapeDtypeStruct((B, Sp, Hp), out_dtype),
        grid_spec=pltpu.PrefetchScalarGridSpec(
            num_scalar_prefetch=2,
            grid=(B, n_steps),
            in_specs=[
                pl.BlockSpec((1, ts, Hp),
                             lambda b, s, qi_r, ki_r: (b, qi_r[s], 0)),
                pl.BlockSpec((1, ts, Hp),
                             lambda b, s, qi_r, ki_r: (b, ki_r[s], 1)),
                pl.BlockSpec((1, ts, Hp),
                             lambda b, s, qi_r, ki_r: (b, ki_r[s], 2)),
            ],
            out_specs=pl.BlockSpec((1, ts, Hp),
                                   lambda b, s, qi_r, ki_r: (b, qi_r[s], 0)),
            scratch_shapes=[
                pltpu.VMEM((ts, 1), jnp.float32),    # running max m
                pltpu.VMEM((ts, 1), jnp.float32),    # running denom l
                pltpu.VMEM((ts, Hp), jnp.float32),   # output accumulator
            ],
        ),
        compiler_params=pltpu.CompilerParams(
            dimension_semantics=("parallel", "arbitrary"),
            vmem_limit_bytes=vlim2),
    )(qi_arr, ki_arr, qkv, qkv, qkv)

    out = out_p
    if Sp != S:
        out = out[:, :S]
    if Hp != H:
        out = out[..., :H]
    return out


def causal_self_attention_unfused(x, wq, bq, wk, bk, wv, bv, **kwargs):
    """Convenience wrapper that fuses/pads the params per call (prefer
    prepare_qkv_params + causal_self_attention in serving loops)."""
    w_qkv, b_qkv, H = prepare_qkv_params(wq, bq, wk, bk, wv, bv)
    return causal_self_attention(x, w_qkv, b_qkv, H, **kwargs)


# ---------------------------------------------------------------------------
# Pure-JAX reference + test
# ---------------------------------------------------------------------------
def _reference(x, wq, bq, wk, bk, wv, bv):
    hi = lax.Precision.HIGHEST
    q = jnp.dot(x, wq, precision=hi) + bq.reshape(1, -1)
    k = jnp.dot(x, wk, precision=hi) + bk.reshape(1, -1)
    v = jnp.dot(x, wv, precision=hi) + bv.reshape(1, -1)
    scores = jnp.einsum("bqd,bkd->bqk", q, k, precision=hi) / math.sqrt(q.shape[-1])
    S = x.shape[1]
    mask = jnp.tril(jnp.ones((S, S), dtype=bool))
    scores = jnp.where(mask[None], scores, -jnp.inf)
    weights = jax.nn.softmax(scores, axis=-1)
    return jnp.einsum("bqk,bkd->bqd", weights, v, precision=hi)


if __name__ == "__main__":
    B, S, D_in, H = 2, 8, 32, 32

    key = jax.random.PRNGKey(0)
    kx, kq, kbq, kk_, kbk, kv_, kbv = jax.random.split(key, 7)

    bound = 1.0 / math.sqrt(D_in)
    x = jax.random.normal(kx, (B, S, D_in), dtype=jnp.float32)
    wq = jax.random.uniform(kq, (D_in, H), jnp.float32, -bound, bound)
    bq = jax.random.uniform(kbq, (1, H), jnp.float32, -bound, bound)
    wk = jax.random.uniform(kk_, (D_in, H), jnp.float32, -bound, bound)
    bk = jax.random.uniform(kbk, (1, H), jnp.float32, -bound, bound)
    wv = jax.random.uniform(kv_, (D_in, H), jnp.float32, -bound, bound)
    bv = jax.random.uniform(kbv, (1, H), jnp.float32, -bound, bound)

    # Fuse/pad the projection parameters once (hoisted out of the call path).
    w_qkv, b_qkv, H_true = prepare_qkv_params(wq, bq, wk, bk, wv, bv)

    out = causal_self_attention(x, w_qkv, b_qkv, H_true)
    out = jax.block_until_ready(out)

    ref = _reference(x, wq, bq, wk, bk, wv, bv)
    assert out.shape == (B, S, H), out.shape
    assert jnp.allclose(out, ref, atol=1e-4, rtol=1e-4), "mismatch vs reference"

    # TODO(synk): nn.Dropout with p>0 is not implemented (reference default p=0.0 -> identity).
    print("KERNEL_OK")
</pallas_src>

<mosaic_0001>
module attributes {stable_mosaic.version = 11 : i64} {
  func.func @_qkv_proj_kernel(%arg0: i32, %arg1: i32, %arg2: i32, %arg3: i32, %arg4: memref<1x8x32xf32, #tpu.memory_space<vmem>>, %arg5: memref<32x128xf32, #tpu.memory_space<vmem>>, %arg6: memref<1x128xf32, #tpu.memory_space<vmem>>, %arg7: memref<1x8x128xf32, #tpu.memory_space<vmem>>, %arg8: memref<8x128xf32, #tpu.memory_space<vmem>>) attributes {dimension_semantics = [#tpu.dimension_semantics<parallel>, #tpu.dimension_semantics<parallel>, #tpu.dimension_semantics<parallel>, #tpu.dimension_semantics<arbitrary>], iteration_bounds = array<i64: 2, 1, 3, 1>, scalar_prefetch = 0 : i64, scratch_operands = 1 : i64, tpu.core_type = #tpu.core_type<tc>, window_params = [{transform_indices = @transform_0, window_bounds = array<i64: 1, 8, 32>}, {transform_indices = @transform_1, window_bounds = array<i64: 32, 128>}, {transform_indices = @transform_2, window_bounds = array<i64: 1, 128>}, {transform_indices = @transform_3, window_bounds = array<i64: 1, 8, 128>}]} {
    %c0_i32 = arith.constant 0 : i32
    %0 = arith.cmpi eq, %arg3, %c0_i32 : i32
    %1 = arith.extui %0 : i1 to i32
    %c0_i32_0 = arith.constant 0 : i32
    %2 = arith.cmpi ne, %1, %c0_i32_0 : i32
    scf.if %2 {
      %cst_11 = arith.constant 0.000000e+00 : f32
      %13 = vector.broadcast %cst_11 : f32 to vector<8x128xf32>
      %c0_12 = arith.constant 0 : index
      %c0_13 = arith.constant 0 : index
      %14 = vector.load %arg8[%c0_12, %c0_13] : memref<8x128xf32, #tpu.memory_space<vmem>>, vector<8x128xf32>
      tpu.vector_store %arg8[%c0_12, %c0_13], %13 {strides = array<i32>} : memref<8x128xf32, #tpu.memory_space<vmem>>, vector<8x128xf32>,
    } else {
    }
    %c0 = arith.constant 0 : index
    %c0_1 = arith.constant 0 : index
    %3 = vector.load %arg8[%c0, %c0_1] : memref<8x128xf32, #tpu.memory_space<vmem>>, vector<8x128xf32>
    %c0_2 = arith.constant 0 : index
    %c0_3 = arith.constant 0 : index
    %c0_4 = arith.constant 0 : index
    %4 = vector.load %arg4[%c0_2, %c0_3, %c0_4] : memref<1x8x32xf32, #tpu.memory_space<vmem>>, vector<1x8x32xf32>
    %5 = vector.shape_cast %4 : vector<1x8x32xf32> to vector<8x32xf32>
    %c0_5 = arith.constant 0 : index
    %c0_6 = arith.constant 0 : index
    %6 = vector.load %arg5[%c0_5, %c0_6] : memref<32x128xf32, #tpu.memory_space<vmem>>, vector<32x128xf32>
    %cst = arith.constant dense<0.000000e+00> : vector<8x128xf32>
    %7 = tpu.matmul %5, %6, %cst {dimension_numbers = #tpu.dot_dimension_numbers<[1], [0], [0], [1], [0, 0, 1, 1], [], []>} : vector<8x32xf32>, vector<32x128xf32>, vector<8x128xf32> -> vector<8x128xf32>
    %8 = arith.addf %3, %7 : vector<8x128xf32>
    %c0_7 = arith.constant 0 : index
    %c0_8 = arith.constant 0 : index
    %9 = vector.load %arg8[%c0_7, %c0_8] : memref<8x128xf32, #tpu.memory_space<vmem>>, vector<8x128xf32>
    tpu.vector_store %arg8[%c0_7, %c0_8], %8 {strides = array<i32>} : memref<8x128xf32, #tpu.memory_space<vmem>>, vector<8x128xf32>,
    %c0_i32_9 = arith.constant 0 : i32
    %10 = arith.cmpi eq, %arg3, %c0_i32_9 : i32
    %11 = arith.extui %10 : i1 to i32
    %c0_i32_10 = arith.constant 0 : i32
    %12 = arith.cmpi ne, %11, %c0_i32_10 : i32
    scf.if %12 {
      %c0_11 = arith.constant 0 : index
      %c0_12 = arith.constant 0 : index
      %13 = vector.load %arg8[%c0_11, %c0_12] : memref<8x128xf32, #tpu.memory_space<vmem>>, vector<8x128xf32>
      %c0_13 = arith.constant 0 : index
      %c0_14 = arith.constant 0 : index
      %14 = vector.load %arg6[%c0_13, %c0_14] : memref<1x128xf32, #tpu.memory_space<vmem>>, vector<1x128xf32>
      %15 = vector.broadcast %14 : vector<1x128xf32> to vector<8x128xf32>
      %16 = arith.addf %13, %15 : vector<8x128xf32>
      %c0_15 = arith.constant 0 : index
      %c0_16 = arith.constant 0 : index
      %c0_17 = arith.constant 0 : index
      %17 = vector.load %arg7[%c0_15, %c0_16, %c0_17] : memref<1x8x128xf32, #tpu.memory_space<vmem>>, vector<1x8x128xf32>
      %18 = vector.shape_cast %17 : vector<1x8x128xf32> to vector<8x128xf32>
      %19 = vector.shape_cast %16 : vector<8x128xf32> to vector<1x8x128xf32>
      tpu.vector_store %arg7[%c0_15, %c0_16, %c0_17], %19 {strides = array<i32>} : memref<1x8x128xf32, #tpu.memory_space<vmem>>, vector<1x8x128xf32>,
    } else {
    }
    return
  }
  func.func @transform_0(%arg0: i32, %arg1: i32, %arg2: i32, %arg3: i32) -> (i32, i32, i32) {
    %c0_i32 = arith.constant 0 : i32
    return %arg0, %arg1, %arg3 : i32, i32, i32
  }
  func.func @transform_1(%arg0: i32, %arg1: i32, %arg2: i32, %arg3: i32) -> (i32, i32) {
    %c0_i32 = arith.constant 0 : i32
    return %arg3, %arg2 : i32, i32
  }
  func.func @transform_2(%arg0: i32, %arg1: i32, %arg2: i32, %arg3: i32) -> (i32, i32) {
    %c0_i32 = arith.constant 0 : i32
    %c0_i32_0 = arith.constant 0 : i32
    return %c0_i32, %arg2 : i32, i32
  }
  func.func @transform_3(%arg0: i32, %arg1: i32, %arg2: i32, %arg3: i32) -> (i32, i32, i32) {
    %c0_i32 = arith.constant 0 : i32
    return %arg0, %arg1, %arg2 : i32, i32, i32
  }
}

</mosaic_0001>

<llo_original>
// kernel: tpu_custom_call.1
$region0: #{tpu_custom_call.1}
  #allocation0 [shape = 'u32[]', space=smem, size = 0x4, offset = 0x4, fixed_abs, tag = 'smem constant byte address 0x4 - core index']
  #allocation1 [shape = 'u32[72,128]{1,0:T(1,128)}', space=vmem, size = 0x9000, scoped, tag = 'internal scratch']
  #allocation2 [shape = 'f32[8,128]{1,0:T(8,128)}', space=vmem, size = 0x1000, scoped, tag = 'scratch operand']
  %s0 = inlined_call_operand.hbm [shape: f32[2,8,32], index: 0, kind: input, shape index: {}]
  %s1 = inlined_call_operand.hbm [shape: f32[32,384], index: 1, kind: input, shape index: {}]
  %s2 = inlined_call_operand.hbm [shape: f32[1,384], index: 2, kind: input, shape index: {}]
  %s3 = inlined_call_operand.hbm [shape: f32[2,8,384], index: 3, kind: output, shape index: {}]
  %s4 = sld [smem:[#allocation0]]
  $region65: #{tpu_custom_call.1} parent=0
    _
  %s6 = ssub.s32 1, %s4
  %s7 = scalar_select 0, %s6, %s4
  $region1: #{tpu_custom_call.1} parent=0
    #allocation3 [shape = 'u8[8192]{0}', space=vmem, size = 0x2000, scoped, tag = 'input window, operand 0']
    #allocation4 [shape = 's32[2]{0}', space=sflag, size = 0x8, scoped, tag = 'scoped memory for tpu_custom_call.1']
    #allocation5 [shape = 's32[2]{0}', space=sflag, size = 0x8, scoped, tag = 'scoped memory for tpu_custom_call.1']
    #allocation6 [shape = 'u8[32768]{0}', space=vmem, size = 0x8000, scoped, tag = 'input window, operand 1']
    #allocation7 [shape = 's32[2]{0}', space=sflag, size = 0x8, scoped, tag = 'scoped memory for tpu_custom_call.1']
    #allocation8 [shape = 'u8[1024]{0}', space=vmem, size = 0x400, scoped, tag = 'input window, operand 2']
    #allocation9 [shape = 'u8[8192]{0}', space=vmem, size = 0x2000, scoped, tag = 'output window, operand 0']
    %8 = vsyncpa [#allocation4], 0
    %s9 = scalar_lea.sflag [#allocation4], 1
    %10 = vsyncpa %s9, 0
    %11 = vsyncpa [#allocation7], 0
    %s12 = scalar_lea.sflag [#allocation7], 1
    %13 = vsyncpa %s12, 0
    %14 = vsyncpa [#allocation5], 0
    %s15 = scalar_lea.sflag [#allocation5], 1
    %16 = vsyncpa %s15, 0
    loop: start=0, step=1, limit=8
    $region2: #{tpu_custom_call.1} parent=1 // loop_pre_header
      _
    $region3: #{tpu_custom_call.1} parent=1 // loop_header
      %s18 = sphi 0, %s22
      %p19 = scmp.ge.s32.totalorder %s18, 8
      %s25 = sphi 0, %s51
      %s26 = sphi 0, %s47
      %s27 = sphi 0, %s43
      %s28 = sphi 0, %s39
      %s29 = sphi 0, %s25
      %s30 = sphi 0, %s26
      %s31 = sphi 0, %s27
      %s32 = sphi 0, %s28
      %s33 = sphi 0, %s29
      %s34 = sphi 0, %s30
      %s35 = sphi 0, %s31
      %s36 = sphi 0, %s32
      %s58 = sphi 0, %s60
      %s61 = sphi 0, %s58
      %s62 = sphi 0, %s61
      %s78 = sphi 0, %s62
      %s86 = sphi 0, %s88
      %s89 = sphi 0, %s86
      %s90 = sphi 0, %s89
      %s106 = sphi 0, %s90
      %s112 = sphi 0, %s114
      %s115 = sphi 0, %s112
      %s116 = sphi 0, %s115
      %s132 = sphi 0, %s116
      %s142 = sphi 0, %s144
      %s145 = sphi 0, %s142
      %s146 = sphi 0, %s145
      %s162 = sphi 0, %s146
    $region4: #{tpu_custom_call.1} parent=1 // loop_header_branch
      %21 = sbr.rel (%p19) target = $region8
    $region5: #{tpu_custom_call.1} parent=1 // loop_body
      %s23 = ssub.s32 %s18, 1
      %s24 = ssub.s32 %s18, 2
      %s37 = sadd.s32 1, %s28
      %p38 = scmp.ge.s32.totalorder %s37, 1
      %s39 = scalar_select %p38, 0, %s37
      %s40 = sadd.s32 1, %s27
      %s41 = scalar_select %p38, %s40, %s27
      %p42 = scmp.ge.s32.totalorder %s41, 3
      %s43 = scalar_select %p42, 0, %s41
      %s44 = sadd.s32 1, %s26
      %s45 = scalar_select %p42, %s44, %s26
      %p46 = scmp.ge.s32.totalorder %s45, 1
      %s47 = scalar_select %p46, 0, %s45
      %s48 = sadd.s32 1, %s25
      %s49 = scalar_select %p46, %s48, %s25
      %p50 = scmp.ge.s32.totalorder %s49, 2
      %s51 = scalar_select %p50, 0, %s49
      %s52 = ssub.s32 %s25, %s51
      %s53 = ssub.s32 %s26, %s47
      %s54 = sor.u32 %s52, %s53
      %s55 = ssub.s32 %s28, %s39
      %s56 = sor.u32 %s54, %s55
      %p57 = scmp.eq.s32.totalorder %s56, 0
      %s59 = sadd.s32 %s58, 1
      %s60 = scalar_select %p57, %s58, %s59
      %p63 = pneg %p57
      %p64 = scmp.eq.s32.totalorder %s18, 5
      %p65 = por %p63, %p64
      %p66 = scmp.ne.s32.totalorder %s58, %s61
      %p67 = scmp.eq.s32.totalorder %s18, 0
      %p68 = por %p66, %p67
      %p69 = scmp.ne.s32.totalorder %s58, %s61
      %p70 = scmp.eq.s32.totalorder %s23, 5
      %p71 = por %p69, %p70
      %p72 = scmp.ne.s32.totalorder %s61, %s62
      %p73 = scmp.eq.s32.totalorder %s23, 0
      %p74 = por %p72, %p73
      %p75 = scmp.ne.s32.totalorder %s61, %s62
      %p76 = scmp.eq.s32.totalorder %s24, 5
      %p77 = por %p75, %p76
      %p79 = scmp.ne.s32.totalorder %s62, %s78
      %p80 = scmp.eq.s32.totalorder %s24, 0
      %p81 = por %p79, %p80
      %s82 = ssub.s32 %s28, %s39
      %s83 = ssub.s32 %s27, %s43
      %s84 = sor.u32 %s82, %s83
      %p85 = scmp.eq.s32.totalorder %s84, 0
      %s87 = sadd.s32 %s86, 1
      %s88 = scalar_select %p85, %s86, %s87
      %p91 = pneg %p85
      %p92 = scmp.eq.s32.totalorder %s18, 5
      %p93 = por %p91, %p92
      %p94 = scmp.ne.s32.totalorder %s86, %s89
      %p95 = scmp.eq.s32.totalorder %s18, 0
      %p96 = por %p94, %p95
      %p97 = scmp.ne.s32.totalorder %s86, %s89
      %p98 = scmp.eq.s32.totalorder %s23, 5
      %p99 = por %p97, %p98
      %p100 = scmp.ne.s32.totalorder %s89, %s90
      %p101 = scmp.eq.s32.totalorder %s23, 0
      %p102 = por %p100, %p101
      %p103 = scmp.ne.s32.totalorder %s89, %s90
      %p104 = scmp.eq.s32.totalorder %s24, 5
      %p105 = por %p103, %p104
      %p107 = scmp.ne.s32.totalorder %s90, %s106
      %p108 = scmp.eq.s32.totalorder %s24, 0
      %p109 = por %p107, %p108
      %s110 = ssub.s32 %s27, %s43
      %p111 = scmp.eq.s32.totalorder %s110, 0
      %s113 = sadd.s32 %s112, 1
      %s114 = scalar_select %p111, %s112, %s113
      %p117 = pneg %p111
      %p118 = scmp.eq.s32.totalorder %s18, 5
      %p119 = por %p117, %p118
      %p120 = scmp.ne.s32.totalorder %s112, %s115
      %p121 = scmp.eq.s32.totalorder %s18, 0
      %p122 = por %p120, %p121
      %p123 = scmp.ne.s32.totalorder %s112, %s115
      %p124 = scmp.eq.s32.totalorder %s23, 5
      %p125 = por %p123, %p124
      %p126 = scmp.ne.s32.totalorder %s115, %s116
      %p127 = scmp.eq.s32.totalorder %s23, 0
      %p128 = por %p126, %p127
      %p129 = scmp.ne.s32.totalorder %s115, %s116
      %p130 = scmp.eq.s32.totalorder %s24, 5
      %p131 = por %p129, %p130
      %p133 = scmp.ne.s32.totalorder %s116, %s132
      %p134 = scmp.eq.s32.totalorder %s24, 0
      %p135 = por %p133, %p134
      %s136 = ssub.s32 %s25, %s51
      %s137 = ssub.s32 %s26, %s47
      %s138 = sor.u32 %s136, %s137
      %s139 = ssub.s32 %s27, %s43
      %s140 = sor.u32 %s138, %s139
      %p141 = scmp.eq.s32.totalorder %s140, 0
      %s143 = sadd.s32 %s142, 1
      %s144 = scalar_select %p141, %s142, %s143
      %p147 = pneg %p141
      %p148 = scmp.eq.s32.totalorder %s18, 5
      %p149 = por %p147, %p148
      %p150 = scmp.ne.s32.totalorder %s142, %s145
      %p151 = scmp.eq.s32.totalorder %s18, 0
      %p152 = por %p150, %p151
      %p153 = scmp.ne.s32.totalorder %s142, %s145
      %p154 = scmp.eq.s32.totalorder %s23, 5
      %p155 = por %p153, %p154
      %p156 = scmp.ne.s32.totalorder %s145, %s146
      %p157 = scmp.eq.s32.totalorder %s23, 0
      %p158 = por %p156, %p157
      %p159 = scmp.ne.s32.totalorder %s145, %s146
      %p160 = scmp.eq.s32.totalorder %s24, 5
      %p161 = por %p159, %p160
      %p163 = scmp.ne.s32.totalorder %s146, %s162
      %p164 = scmp.eq.s32.totalorder %s24, 0
      %p165 = por %p163, %p164
      %p166 = scmp.le.s32.totalorder 1, %s18
      %p167 = scmp.lt.s32.totalorder %s18, 7
      %p168 = pnand %p166, %p167
      %p169 = pneg %p168
      // Predicated region
      $region9: #{tpu_custom_call.1} parent=5 // pred_check
        _
      $region10: #{tpu_custom_call.1} parent=5 // pred_check_branch
        %171 = sbr.rel (%p168) target = $region12
      $region11: #{tpu_custom_call.1} parent=5 // pred_region
        %s172 = ssub.s32 %s18, 1
      $region12: #{tpu_custom_call.1} parent=5 // pred_fallthru
        _
      %p173 = scmp.lt.s32.totalorder %s18, 6
      // Predicated region
      $region13: #{tpu_custom_call.1} parent=5 // pred_check
        %p174 = pneg %p173
      $region14: #{tpu_custom_call.1} parent=5 // pred_check_branch
        %176 = sbr.rel (%p174) target = $region16
      $region15: #{tpu_custom_call.1} parent=5 // pred_region
        // Predicated region
        $region17: #{tpu_custom_call.1} parent=15 // pred_check
          %p177 = pneg %p68
        $region18: #{tpu_custom_call.1} parent=15 // pred_check_branch
          %179 = sbr.rel (%p177) target = $region20
        $region19: #{tpu_custom_call.1} parent=15 // pred_region
          %s180 = sand.u32 %s58, 1
          %s181 = scalar_lea.sflag [#allocation4], %s180
          %s182 = sand.u32 %s58, 1
          %s183 = smul.addr %s182, 8
          %s184 = scalar_lea.vmem [#allocation3], %s183
          %186 = vsyncadd %s181, 0
          %s187 = sadd.s32 %s28, %s26
          %s188 = sadd.s32 %s187, %s25
          %s189 = smul.addr %s188, 8
          %s190 = scalar_lea.hbm %s0, %s189
          %s192 = sshll.u32 %s190, 4
          %s193 = int_to_ptr.hbm [resolvable:$true] %s192
          %s194 = sshll.u32 %s184, 4
          %s195 = int_to_ptr.vmem [resolvable:$true] %s194
          %197 = dma.hbm_to_vmem [thread:$0]  %s193, 128, %s195, %s181
        $region20: #{tpu_custom_call.1} parent=15 // pred_fallthru
          _
        // Predicated region
        $region21: #{tpu_custom_call.1} parent=15 // pred_check
          %p198 = pneg %p96
        $region22: #{tpu_custom_call.1} parent=15 // pred_check_branch
          %200 = sbr.rel (%p198) target = $region24
        $region23: #{tpu_custom_call.1} parent=15 // pred_region
          %s201 = sand.u32 %s18, 1
          %s202 = scalar_lea.sflag [#allocation7], %s201
          %s203 = sand.u32 %s86, 1
          %s204 = smul.addr %s203, 32
          %s205 = scalar_lea.vmem [#allocation6], %s204
          %s206 = smul.u32 4, %s28
          %208 = vsyncadd %s202, 0
          %s209 = smul.addr %s206, 3
          %s210 = sadd.s32 %s27, %s209
          %s211 = smul.addr %s210, 8
          %s212 = scalar_lea.hbm %s1, %s211
          %s213 = sshll.u32 %s212, 4
          %s214 = int_to_ptr.hbm [resolvable:$true] %s213
          %s215 = sshll.u32 %s205, 4
          %s216 = int_to_ptr.vmem [resolvable:$true] %s215
          %221 = dma.hbm_to_vmem [thread:$0]  %s214, 512, %s216, %s202, 384, 128, 8
        $region24: #{tpu_custom_call.1} parent=15 // pred_fallthru
          _
        // Predicated region
        $region25: #{tpu_custom_call.1} parent=15 // pred_check
          %p222 = pneg %p122
        $region26: #{tpu_custom_call.1} parent=15 // pred_check_branch
          %224 = sbr.rel (%p222) target = $region28
        $region27: #{tpu_custom_call.1} parent=15 // pred_region
          %s225 = sand.u32 %s18, 1
          %s226 = scalar_lea.sflag [#allocation7], %s225
          %s227 = sand.u32 %s112, 1
          %s228 = scalar_lea.vmem [#allocation8], %s227
          %230 = vsyncadd %s226, 0
          %s231 = scalar_lea.hbm %s2, %s27
          %s233 = sshll.u32 %s231, 4
          %s234 = int_to_ptr.hbm [resolvable:$true] %s233
          %s235 = sshll.u32 %s228, 4
          %s236 = int_to_ptr.vmem [resolvable:$true] %s235
          %238 = dma.hbm_to_vmem [thread:$0]  %s234, 16, %s236, %s226
        $region28: #{tpu_custom_call.1} parent=15 // pred_fallthru
          _
      $region16: #{tpu_custom_call.1} parent=5 // pred_fallthru
        _
      %p239 = scmp.le.s32.totalorder 1, %s18
      %p240 = scmp.lt.s32.totalorder %s18, 7
      %p241 = pnand %p239, %p240
      %p242 = pneg %p241
      // Predicated region
      $region29: #{tpu_custom_call.1} parent=5 // pred_check
        _
      $region30: #{tpu_custom_call.1} parent=5 // pred_check_branch
        %244 = sbr.rel (%p241) target = $region32
      $region31: #{tpu_custom_call.1} parent=5 // pred_region
        %s245 = ssub.s32 %s18, 1
        %s246 = sand.u32 %s61, 1
        %s247 = scalar_lea.sflag [#allocation4], %s246
        %s248 = sand.u32 %s61, 1
        %s249 = smul.addr %s248, 8
        %s250 = scalar_lea.vmem [#allocation3], %s249
        // Predicated region
        $region33: #{tpu_custom_call.1} parent=31 // pred_check
          %p251 = pneg %p74
        $region34: #{tpu_custom_call.1} parent=31 // pred_check_branch
          %253 = sbr.rel (%p251) target = $region36
        $region35: #{tpu_custom_call.1} parent=31 // pred_region
          %255 = dma.done %s247, 128
        $region36: #{tpu_custom_call.1} parent=31 // pred_fallthru
          _
        %s256 = sand.u32 %s23, 1
        %s257 = scalar_lea.sflag [#allocation7], %s256
        %s258 = sand.u32 %s89, 1
        %s259 = smul.addr %s258, 32
        %s260 = scalar_lea.vmem [#allocation6], %s259
        // Predicated region
        $region37: #{tpu_custom_call.1} parent=31 // pred_check
          %p261 = pneg %p102
        $region38: #{tpu_custom_call.1} parent=31 // pred_check_branch
          %263 = sbr.rel (%p261) target = $region40
        $region39: #{tpu_custom_call.1} parent=31 // pred_region
          %265 = dma.done %s257, 512
        $region40: #{tpu_custom_call.1} parent=31 // pred_fallthru
          _
        %s266 = sand.u32 %s23, 1
        %s267 = scalar_lea.sflag [#allocation7], %s266
        %s268 = sand.u32 %s115, 1
        %s269 = scalar_lea.vmem [#allocation8], %s268
        // Predicated region
        $region41: #{tpu_custom_call.1} parent=31 // pred_check
          %p270 = pneg %p128
        $region42: #{tpu_custom_call.1} parent=31 // pred_check_branch
          %272 = sbr.rel (%p270) target = $region44
        $region43: #{tpu_custom_call.1} parent=31 // pred_region
          %274 = dma.done %s267, 16
        $region44: #{tpu_custom_call.1} parent=31 // pred_fallthru
          _
        %s275 = sand.u32 %s61, 1
        %s276 = scalar_lea.sflag [#allocation4], %s275
        %s277 = sand.u32 %s61, 1
        %s278 = smul.addr %s277, 8
        %s279 = scalar_lea.vmem [#allocation3], %s278
        %p280 = pneg %p74
        %p281 = pneg %p71
        %s282 = sand.u32 %s23, 1
        %s283 = scalar_lea.sflag [#allocation7], %s282
        %s284 = sand.u32 %s89, 1
        %s285 = smul.addr %s284, 32
        %s286 = scalar_lea.vmem [#allocation6], %s285
        %p287 = pneg %p102
        %p288 = pneg %p99
        %s289 = sand.u32 %s23, 1
        %s290 = scalar_lea.sflag [#allocation7], %s289
        %s291 = sand.u32 %s115, 1
        %s292 = scalar_lea.vmem [#allocation8], %s291
        %p293 = pneg %p128
        %p294 = pneg %p125
        %p295 = pneg %p158
        %p296 = pneg %p155
        %s297 = sand.u32 %s145, 1
        %s298 = scalar_lea.sflag [#allocation5], %s297
        %s299 = sand.u32 %s145, 1
        %s300 = smul.addr %s299, 8
        %s301 = scalar_lea.vmem [#allocation9], %s300
        %s302 = smul.u32 4, %s32
        %p303 = scmp.eq.s32.totalorder %s32, 0
        // Predicated region
        $region45: #{tpu_custom_call.1} parent=31 // pred_check
          %p304 = pneg %p303
        $region46: #{tpu_custom_call.1} parent=31 // pred_check_branch
          %306 = sbr.rel (%p304) target = $region48
        $region47: #{tpu_custom_call.1} parent=31 // pred_region
          %307 = vst [vmem:[#allocation2] sm:$0xff] 0.0
        $region48: #{tpu_custom_call.1} parent=31 // pred_fallthru
          _
        %v308 = vld [vmem:[#allocation2] sm:$0xff]
        %v309 = vld [vmem:[%s250] sm:$0xff]
        %v310 = vld [vmem:[%s260] sm:$0xff]
        %v311 = vld [vmem:[%s260 + $0x8] sm:$0xff]
        %v312 = vld [vmem:[%s260 + $0x10] sm:$0xff]
        %v313 = vld [vmem:[%s260 + $0x18] sm:$0xff]
        %vm314 = vcmask 261120
        %v316 = vsel %vm314, %v309, 0
        %318 = vmatpush.msra.mxu0 0.0
        %319 = vmatpush.msra.mxu0 0.0
        %320 = vmatpush.msra.mxu0 0.0
        %321 = vmatpush.msra.mxu0 0.0
        %322 = vmatpush.msra.mxu0 0.0
        %323 = vmatpush.msra.mxu0 0.0
        %324 = vmatpush.msra.mxu0 0.0
        %325 = vmatpush.msra.mxu0 0.0
        %326 = vmatpush.msra.mxu0 0.0
        %327 = vmatpush.msra.mxu0 0.0
        %328 = vmatpush.msra.mxu0 0.0
        %329 = vmatpush.msra.mxu0 0.0
        %330 = vmatpush.msra.mxu0 %v313
        %331 = vmatpush.msra.mxu0 %v312
        %332 = vmatpush.msra.mxu0 %v311
        %333 = vmatpush.msra.mxu0 %v310
        %334 = vmatmul.f32.gmra.mxu0 %v316
        %v335 = vpop.f32.mrf.mxu0
        %v336 = vadd.f32 0.0, %v335
        %337 = vdwg.mxu0
        %v338 = vadd.f32 %v308, %v336
        %339 = vst [vmem:[#allocation2] sm:$0xff] %v338
        // Predicated region
        $region49: #{tpu_custom_call.1} parent=31 // pred_check
          %p340 = pneg %p303
        $region50: #{tpu_custom_call.1} parent=31 // pred_check_branch
          %342 = sbr.rel (%p340) target = $region52
        $region51: #{tpu_custom_call.1} parent=31 // pred_region
          %v343 = vld [vmem:[#allocation2] sm:$0xff]
          %v344 = vld [vmem:[%s269] sm:$0x1]
          %v346 = vperm.slane %v344, 0
          %v348 = vadd.f32 %v343, %v346
          %349 = vst [vmem:[%s301] sm:$0xff] %v348
        $region52: #{tpu_custom_call.1} parent=31 // pred_fallthru
          _
        %s350 = sand.u32 %s145, 1
        %s351 = scalar_lea.sflag [#allocation5], %s350
        %s352 = sand.u32 %s145, 1
        %s353 = smul.addr %s352, 8
        %s354 = scalar_lea.vmem [#allocation9], %s353
        // Predicated region
        $region53: #{tpu_custom_call.1} parent=31 // pred_check
          %p355 = pneg %p155
        $region54: #{tpu_custom_call.1} parent=31 // pred_check_branch
          %357 = sbr.rel (%p355) target = $region56
        $region55: #{tpu_custom_call.1} parent=31 // pred_region
          %359 = vsyncadd %s351, 0
          %s360 = smul.addr %s30, 3
          %s361 = sadd.s32 %s31, %s360
          %s362 = smul.addr %s29, 3
          %s363 = sadd.s32 %s361, %s362
          %s364 = smul.addr %s363, 8
          %s365 = scalar_lea.hbm %s3, %s364
          %s367 = sshll.u32 %s354, 4
          %s368 = int_to_ptr.vmem [resolvable:$true] %s367
          %s369 = sshll.u32 %s365, 4
          %s370 = int_to_ptr.hbm [resolvable:$true] %s369
          %372 = dma.vmem_to_hbm [thread:$0]  %s368, 128, %s370, %s351
        $region56: #{tpu_custom_call.1} parent=31 // pred_fallthru
          _
      $region32: #{tpu_custom_call.1} parent=5 // pred_fallthru
        _
      %p373 = scmp.le.s32.totalorder 2, %s18
      // Predicated region
      $region57: #{tpu_custom_call.1} parent=5 // pred_check
        %p374 = pneg %p373
      $region58: #{tpu_custom_call.1} parent=5 // pred_check_branch
        %376 = sbr.rel (%p374) target = $region60
      $region59: #{tpu_custom_call.1} parent=5 // pred_region
        %s377 = ssub.s32 %s18, 2
        // Predicated region
        $region61: #{tpu_custom_call.1} parent=59 // pred_check
          %p378 = pneg %p161
        $region62: #{tpu_custom_call.1} parent=59 // pred_check_branch
          %380 = sbr.rel (%p378) target = $region64
        $region63: #{tpu_custom_call.1} parent=59 // pred_region
          %s381 = sand.u32 %s146, 1
          %s382 = scalar_lea.sflag [#allocation5], %s381
          %s383 = sand.u32 %s146, 1
          %s384 = smul.addr %s383, 8
          %s385 = scalar_lea.vmem [#allocation9], %s384
          %387 = dma.done %s382, 128
        $region64: #{tpu_custom_call.1} parent=59 // pred_fallthru
          _
      $region60: #{tpu_custom_call.1} parent=5 // pred_fallthru
        _
    $region6: #{tpu_custom_call.1} parent=1 // loop_footer
      %s22 = sadd.s32 1, %s18
    $region7: #{tpu_custom_call.1} parent=1 // loop_footer_branch
      %17 = sbr.rel target = $region3
    $region8: #{tpu_custom_call.1} parent=1 // loop_exit
      _
    %388 = vsyncpa [#allocation4], 1
    %s389 = scalar_lea.sflag [#allocation4], 1
    %390 = vsyncpa %s389, 1
    %391 = vsyncpa [#allocation7], 1
    %s392 = scalar_lea.sflag [#allocation7], 1
    %393 = vsyncpa %s392, 1
    %394 = vsyncpa [#allocation5], 1
    %s395 = scalar_lea.sflag [#allocation5], 1
    %396 = vsyncpa %s395, 1

</llo_original>
